<compile_context>
chip_gen: v6e
topology: v6e:2x2x1
jax: 0.10.0
libtpu: 0.0.40
codegen_flags: <defaults>
</compile_context>

<pallas_src>
import functools

import numpy as np
import jax
import jax.numpy as jnp
from jax.experimental import pallas as pl
from jax.experimental.pallas import tpu as pltpu

# ----------------------------------------------------------------------------
# Constants the original model depends on (MultiWOZ-style DST setup, small).
# ----------------------------------------------------------------------------
EXPERIMENT_DOMAINS = ["hotel", "train", "restaurant", "attraction", "taxi"]
SLOT = [f"slot-{i}" for i in range(8)]
SLOT_GATE = ["none", "dontcare", "predict"]
slotgate2id = {g: i for i, g in enumerate(SLOT_GATE)}

ND = len(EXPERIMENT_DOMAINS)   # 5
NS = len(SLOT)                 # 8
NG = len(SLOT_GATE)            # 3

HIDDEN = 128                   # config().hidden_size is 768; scaled down, lane-aligned
VOCAB = 64

# Packed lane-dense span-head slab (width 128 -> unmasked vst stores).
PACK_W = 128
ST_LO, ST_HI = 0, NS           # start-span scores
EN_LO, EN_HI = NS, 2 * NS      # end-span scores
assert EN_HI <= PACK_W

# Packed cls-head slab (plain XLA matmul, f32, no padding needed).
CLS_DOM_LO, CLS_DOM_HI = 0, ND
CLS_SLOT_LO, CLS_SLOT_HI = CLS_DOM_HI, CLS_DOM_HI + NS
CLS_GATE_LO, CLS_GATE_HI = CLS_SLOT_HI, CLS_SLOT_HI + NS * NG
CLS_W = CLS_GATE_HI


def _round_up(x, m):
    return ((x + m - 1) // m) * m


# ----------------------------------------------------------------------------
# Pallas kernel: fused start|end span heads over a tile of tokens.
# ----------------------------------------------------------------------------
def span_heads_kernel(h_ref, w_ref, b_ref, out_ref):
    """h_ref: [TILE_BL, D] bf16; w_ref: [D, 128] bf16 (wst|wen|pad);
    b_ref: [1, 128] f32; out_ref: [TILE_BL, 128] bf16 (cast on store)."""
    acc = (
        jnp.dot(h_ref[...], w_ref[...], preferred_element_type=jnp.float32)
        + b_ref[...]
    )
    out_ref[...] = acc.astype(out_ref.dtype)


def run_span_heads(h_bf16, w_span, b_span, tile_bl, vmem_limit):
    BL, D = h_bf16.shape
    assert BL % tile_bl == 0, "caller pads the token axis up to the tile"
    grid = (BL // tile_bl,)
    return pl.pallas_call(
        span_heads_kernel,
        out_shape=jax.ShapeDtypeStruct((BL, PACK_W), jnp.bfloat16),
        grid_spec=pltpu.PrefetchScalarGridSpec(
            num_scalar_prefetch=0,
            grid=grid,
            in_specs=[
                pl.BlockSpec((tile_bl, D), lambda i: (i, 0)),
                # Grid-invariant blocks: single buffer (second buffer is dead VMEM).
                pl.BlockSpec((D, PACK_W), lambda i: (0, 0),
                             pipeline_mode=pl.Buffered(1)),
                pl.BlockSpec((1, PACK_W), lambda i: (0, 0),
                             pipeline_mode=pl.Buffered(1)),
            ],
            out_specs=pl.BlockSpec((tile_bl, PACK_W), lambda i: (i, 0)),
        ),
        compiler_params=pltpu.CompilerParams(
            dimension_semantics=("parallel",),
            vmem_limit_bytes=int(vmem_limit),
        ),
    )(h_bf16, w_span, b_span)


def _span_tile_and_vmem(bl):
    """Per-generation tile / VMEM budget: 64 MiB VMEM on v7x, 128 MiB on v5e/v6e."""
    vmem_physical = None
    try:
        info = pltpu.get_tpu_info()
        for name in ("vmem_capacity_bytes", "vmem_size_bytes", "vmem_bytes"):
            v = getattr(info, name, None)
            if v:
                vmem_physical = int(v)
                break
    except Exception:
        pass
    if not vmem_physical:
        vmem_physical = 64 * 1024 * 1024          # assume v7x (worst case) if unknown
    vmem_limit = min((vmem_physical * 3) // 4, 96 * 1024 * 1024)  # 48 MiB v7x / 96 MiB v5e,v6e

    # Double-buffered per-row VMEM: bf16 H input + bf16 packed output.
    row_bytes = 2 * (HIDDEN * 2) + 2 * (PACK_W * 2)
    max_tile = int(vmem_limit * 0.75) // row_bytes
    tile = min(4096, max_tile)                    # >= ~1 MiB of H per grid step at D=128
    if bl > 16:                                   # keep >= 2 steps so both v7x TCs get work
        tile = min(tile, _round_up(-(-bl // 2), 16))
    tile = max(16, (tile // 16) * 16)             # bf16 (16,128) minimum tile
    return tile, int(vmem_limit)


# ----------------------------------------------------------------------------
# Parameter construction (deterministic, mimics nn.Linear default init).
# ----------------------------------------------------------------------------
def _linear(key, fan_in, fan_out):
    k1, k2 = jax.random.split(key)
    bound = 1.0 / np.sqrt(fan_in)
    w = jax.random.uniform(k1, (fan_in, fan_out), jnp.float32, -bound, bound)
    b = jax.random.uniform(k2, (1, fan_out), jnp.float32, -bound, bound)
    return w, b


def make_params(key):
    ks = jax.random.split(key, 10)
    D = HIDDEN
    wd, bd = _linear(ks[0], D, ND)
    ws, bs = _linear(ks[1], D, NS)
    # NS independent slot_gate_linears (D -> D), stacked
    wg_list, bg_list = [], []
    for k in jax.random.split(ks[2], NS):
        w, b = _linear(k, D, D)
        wg_list.append(w)
        bg_list.append(b[0])
    wg = jnp.stack(wg_list, 0)          # [NS, D, D]
    bg = jnp.stack(bg_list, 0)          # [NS, D]
    wgate, bgate = _linear(ks[3], D, NG)
    # NS independent start/end Linear(D, 1), stacked into [D, NS] / [1, NS]
    wst_cols, bst_vals, wen_cols, ben_vals = [], [], [], []
    for k in jax.random.split(ks[4], NS):
        w, b = _linear(k, D, 1)
        wst_cols.append(w[:, 0]); bst_vals.append(b[0, 0])
    for k in jax.random.split(ks[5], NS):
        w, b = _linear(k, D, 1)
        wen_cols.append(w[:, 0]); ben_vals.append(b[0, 0])
    wst = jnp.stack(wst_cols, 1); bst = jnp.stack(bst_vals)[None, :]
    wen = jnp.stack(wen_cols, 1); ben = jnp.stack(ben_vals)[None, :]
    # TODO(synk): encode_model is an external pretrained BERT in the original
    # module; replaced here with a deterministic toy embedding encoder.
    emb = 0.02 * jax.random.normal(ks[6], (VOCAB, D), jnp.float32)
    type_emb = 0.02 * jax.random.normal(ks[7], (2, D), jnp.float32)
    wpool, bpool = _linear(ks[8], D, D)
    return dict(
        wd=wd, bd=bd, ws=ws, bs=bs, wg=wg, bg=bg,
        wgate=wgate, bgate=bgate, wst=wst, bst=bst, wen=wen, ben=ben,
        emb=emb, type_emb=type_emb, wpool=wpool, bpool=bpool,
    )


def prepare_inference_params(p):
    """One-time weight fusion / packing (free at inference)."""
    D = HIDDEN
    hi = jax.lax.Precision.HIGHEST
    # Fused gate classifier: (cls @ wg[s] + bg[s]) @ wgate + bgate  (kept in f32)
    w_gate_fused = jnp.einsum("sde,eg->dsg", p["wg"], p["wgate"],
                              precision=hi).reshape(D, NS * NG)
    b_gate_fused = (jnp.einsum("se,eg->sg", p["bg"], p["wgate"], precision=hi)
                    + p["bgate"]).reshape(NS * NG)

    # cls heads stay f32 (tiny, runs as one XLA matmul fused with the pooler).
    w_cls = jnp.concatenate([p["wd"], p["ws"], w_gate_fused], axis=1)   # [D, CLS_W]
    b_cls = jnp.concatenate(
        [p["bd"][0], p["bs"][0], b_gate_fused], axis=0)[None, :]        # [1, CLS_W]

    # span heads: bf16 weights, lane-dense 128-wide slab (16 real cols + pad)
    w_span = jnp.zeros((D, PACK_W), jnp.float32)
    w_span = w_span.at[:, ST_LO:ST_HI].set(p["wst"])
    w_span = w_span.at[:, EN_LO:EN_HI].set(p["wen"])
    b_span = jnp.zeros((1, PACK_W), jnp.float32)
    b_span = b_span.at[:, ST_LO:ST_HI].set(p["bst"])
    b_span = b_span.at[:, EN_LO:EN_HI].set(p["ben"])

    return dict(
        W_cls=w_cls, b_cls=b_cls,                     # f32 (drives dynamic shapes)
        W_span=w_span.astype(jnp.bfloat16),           # bf16 MXU operand
        b_span=b_span,                                # f32 bias (epilogue stays f32)
        bgate=p["bgate"],                             # host-side bias-row padding semantics
        emb=p["emb"].astype(jnp.bfloat16),            # bf16 encoder -> bf16 H directly
        type_emb=p["type_emb"].astype(jnp.bfloat16),
        wpool=p["wpool"], bpool=p["bpool"],
    )


# ----------------------------------------------------------------------------
# Device-side forward (jitted): toy encoder + fused cls heads + span Pallas kernel.
# ----------------------------------------------------------------------------
@functools.partial(jax.jit, static_argnums=(4, 5))
def _device_forward(fp, content_ids, token_type_ids, attention_mask, tile_bl, vmem_limit):
    B, L = content_ids.shape
    D = HIDDEN
    # TODO(synk): encode_model is an external pretrained BERT in the original
    # module; replaced here with a deterministic toy embedding encoder (bf16).
    H = fp["emb"][content_ids] + fp["type_emb"][token_type_ids]          # [B, L, D] bf16
    H = H * attention_mask.astype(jnp.bfloat16)[..., None]
    cls_output = jnp.tanh(
        jnp.dot(H[:, 0, :].astype(jnp.float32), fp["wpool"]) + fp["bpool"])   # [B, D] f32

    # All cls-driven heads as one fused f32 matmul (fuses with the pooler in XLA).
    packed_cls = jnp.dot(cls_output, fp["W_cls"]) + fp["b_cls"]          # [B, CLS_W]
    domain_score = packed_cls[:, CLS_DOM_LO:CLS_DOM_HI]                  # [B, ND]
    slot_pointer_prob = jax.nn.sigmoid(packed_cls[:, CLS_SLOT_LO:CLS_SLOT_HI])  # [B, NS]
    gate_all = packed_cls[:, CLS_GATE_LO:CLS_GATE_HI].reshape(B, NS, NG)
    slot_pointer = slot_pointer_prob > 0.5                               # [B, NS] bool

    # Span heads: bf16 H streamed straight into the Pallas kernel (no f32 copy).
    BL = B * L
    BL_pad = _round_up(BL, tile_bl)
    h_flat = H.reshape(BL, D)
    if BL_pad != BL:
        h_flat = jnp.concatenate(
            [h_flat, jnp.zeros((BL_pad - BL, D), h_flat.dtype)], axis=0)
    span = run_span_heads(h_flat, fp["W_span"], fp["b_span"], tile_bl, vmem_limit)
    span3 = span[:BL].reshape(B, L, PACK_W)
    start_end = span3[:, :, :EN_HI]            # [B, L, 2*NS] bf16, hidden-last layout
    return domain_score, slot_pointer_prob, slot_pointer, gate_all, start_end


# ----------------------------------------------------------------------------
# Full forward (matches BertDST.forward semantics).
# ----------------------------------------------------------------------------
def bertdst_forward(fp, content_ids, token_type_ids, attention_mask, span_tile=None):
    B, L = content_ids.shape
    auto_tile, vmem_limit = _span_tile_and_vmem(B * L)
    tile_bl = span_tile if span_tile is not None else auto_tile

    (domain_score, slot_pointer_prob, slot_pointer, gate_all, start_end) = \
        _device_forward(fp, content_ids, token_type_ids, attention_mask,
                        tile_bl, vmem_limit)

    # --- host-side dynamic-shape logic (mirrors PyTorch .item()/masked_select) ---
    # TODO(synk): data-dependent shapes (max_slot_num / max_predict) require a host
    # sync in the original PyTorch code too; batched into a single device_get here
    # (span scores travel as bf16, only the 2*NS real lanes).
    sp_np, gate_np, se_np, bgate_np = jax.device_get(
        (slot_pointer, gate_all, start_end, fp["bgate"]))
    se_np = np.asarray(se_np, dtype=np.float32)
    start_np = se_np[:, :, ST_LO:ST_HI]        # [B, L, NS] hidden-last
    end_np = se_np[:, :, EN_LO:EN_HI]

    max_slot_num = int(sp_np.sum(-1).max())
    # padded / unselected rows behave like gate_linear(zeros) == bias, exactly as in PyTorch
    slot_gate_score = np.tile(
        np.asarray(bgate_np, np.float32).reshape(1, 1, NG), (B, max_slot_num, 1))
    for i in range(B):
        idx = np.nonzero(sp_np[i])[0]
        if len(idx) > 0:
            slot_gate_score[i, : len(idx), :] = gate_np[i, idx, :]

    slot_gate_prob = jax.nn.softmax(jnp.asarray(slot_gate_score), axis=-1)
    slot_gate = (np.argmax(slot_gate_score, axis=-1) if max_slot_num > 0
                 else np.zeros((B, 0), np.int64))              # [B, max_slot_num]

    predict_id = slotgate2id["predict"]
    max_predict = int((slot_gate == predict_id).sum(-1).max()) if max_slot_num > 0 else 0

    sel_start = np.zeros((B, max_predict, L), np.float32)
    sel_end = np.zeros((B, max_predict, L), np.float32)
    for i in range(B):
        j = 0
        k = 0
        for s in range(NS):
            if sp_np[i, s]:
                if slot_gate[i, j] == predict_id:
                    sel_start[i, k] = start_np[i, :, s]        # hidden-last gather
                    sel_end[i, k] = end_np[i, :, s]
                    k += 1
                j += 1

    start_prob = jax.nn.softmax(jnp.asarray(sel_start), axis=-1)
    end_prob = jax.nn.softmax(jnp.asarray(sel_end), axis=-1)

    return (domain_score, slot_pointer_prob, slot_gate_prob,
            slot_pointer, jnp.asarray(slot_gate), start_prob, end_prob)


# ----------------------------------------------------------------------------
if __name__ == "__main__":
    B, L = 2, 16
    key = jax.random.PRNGKey(0)
    kp, k_ids = jax.random.split(key)

    base_params = make_params(kp)
    fused_params = prepare_inference_params(base_params)

    batch_content_ids = jax.random.randint(k_ids, (B, L), 0, VOCAB, dtype=jnp.int32)
    batch_token_type_ids = jnp.concatenate(
        [jnp.zeros((B, L // 2), jnp.int32), jnp.ones((B, L - L // 2), jnp.int32)], axis=1)
    batch_attention_mask = jnp.ones((B, L), jnp.float32)

    # Auto tile: 16-row (bf16 min-tile) blocks -> 2 parallel grid steps at toy size;
    # at realistic B*L the same logic picks ~4096-row tiles sized to the chip's VMEM.
    outs = bertdst_forward(fused_params, batch_content_ids, batch_token_type_ids,
                           batch_attention_mask)
    for o in outs:
        jax.block_until_ready(jnp.asarray(o))

    print("KERNEL_OK")
</pallas_src>

<mosaic_0001>
module attributes {stable_mosaic.version = 11 : i64} {
  func.func @span_heads_kernel(%arg0: i32, %arg1: memref<16x128xbf16, #tpu.memory_space<vmem>>, %arg2: memref<128x128xbf16, #tpu.memory_space<vmem>>, %arg3: memref<1x128xf32, #tpu.memory_space<vmem>>, %arg4: memref<16x128xbf16, #tpu.memory_space<vmem>>) attributes {dimension_semantics = [#tpu.dimension_semantics<parallel>], iteration_bounds = array<i64: 2>, scalar_prefetch = 0 : i64, scratch_operands = 0 : i64, tpu.core_type = #tpu.core_type<tc>, window_params = [{transform_indices = @transform_0, window_bounds = array<i64: 16, 128>}, {pipeline_mode = #tpu.pipeline_mode<synchronous>, transform_indices = @transform_1, window_bounds = array<i64: 128, 128>}, {pipeline_mode = #tpu.pipeline_mode<synchronous>, transform_indices = @transform_2, window_bounds = array<i64: 1, 128>}, {transform_indices = @transform_3, window_bounds = array<i64: 16, 128>}]} {
    %c0 = arith.constant 0 : index
    %c0_0 = arith.constant 0 : index
    %0 = vector.load %arg1[%c0, %c0_0] : memref<16x128xbf16, #tpu.memory_space<vmem>>, vector<16x128xbf16>
    %c0_1 = arith.constant 0 : index
    %c0_2 = arith.constant 0 : index
    %1 = vector.load %arg2[%c0_1, %c0_2] : memref<128x128xbf16, #tpu.memory_space<vmem>>, vector<128x128xbf16>
    %cst = arith.constant dense<0.000000e+00> : vector<16x128xf32>
    %2 = tpu.matmul %0, %1, %cst {dimension_numbers = #tpu.dot_dimension_numbers<[1], [0], [0], [1], [0, 0, 1, 1], [], []>} : vector<16x128xbf16>, vector<128x128xbf16>, vector<16x128xf32> -> vector<16x128xf32>
    %c0_3 = arith.constant 0 : index
    %c0_4 = arith.constant 0 : index
    %3 = vector.load %arg3[%c0_3, %c0_4] : memref<1x128xf32, #tpu.memory_space<vmem>>, vector<1x128xf32>
    %4 = vector.broadcast %3 : vector<1x128xf32> to vector<16x128xf32>
    %5 = arith.addf %2, %4 : vector<16x128xf32>
    %6 = arith.truncf %5 : vector<16x128xf32> to vector<16x128xbf16>
    %c0_5 = arith.constant 0 : index
    %c0_6 = arith.constant 0 : index
    %7 = vector.load %arg4[%c0_5, %c0_6] : memref<16x128xbf16, #tpu.memory_space<vmem>>, vector<16x128xbf16>
    tpu.vector_store %arg4[%c0_5, %c0_6], %6 {strides = array<i32>} : memref<16x128xbf16, #tpu.memory_space<vmem>>, vector<16x128xbf16>,
    return
  }
  func.func @transform_0(%arg0: i32) -> (i32, i32) {
    %c0_i32 = arith.constant 0 : i32
    %c0_i32_0 = arith.constant 0 : i32
    return %arg0, %c0_i32 : i32, i32
  }
  func.func @transform_1(%arg0: i32) -> (i32, i32) {
    %c0_i32 = arith.constant 0 : i32
    %c0_i32_0 = arith.constant 0 : i32
    %c0_i32_1 = arith.constant 0 : i32
    return %c0_i32, %c0_i32_0 : i32, i32
  }
  func.func @transform_2(%arg0: i32) -> (i32, i32) {
    %c0_i32 = arith.constant 0 : i32
    %c0_i32_0 = arith.constant 0 : i32
    %c0_i32_1 = arith.constant 0 : i32
    return %c0_i32, %c0_i32_0 : i32, i32
  }
  func.func @transform_3(%arg0: i32) -> (i32, i32) {
    %c0_i32 = arith.constant 0 : i32
    %c0_i32_0 = arith.constant 0 : i32
    return %arg0, %c0_i32 : i32, i32
  }
}

</mosaic_0001>

<llo_original>
// kernel: _device_forward.1
$region0: #{_device_forward.1}
  #allocation0 [shape = 'u32[]', space=smem, size = 0x4, offset = 0x4, fixed_abs, tag = 'smem constant byte address 0x4 - core index']
  #allocation1 [shape = 'u32[144,128]{1,0:T(1,128)}', space=vmem, size = 0x12000, scoped, tag = 'internal scratch']
  %s0 = inlined_call_operand.vmem [shape: bf16[32,128], index: 0, kind: input, shape index: {}]
  %s1 = inlined_call_operand.vmem [shape: bf16[128,128], index: 1, kind: input, shape index: {}]
  %s2 = inlined_call_operand.vmem [shape: f32[1,128], index: 2, kind: input, shape index: {}]
  %s3 = inlined_call_operand.hbm [shape: bf16[32,128], index: 3, kind: output, shape index: {}]
  %s4 = sld [smem:[#allocation0]]
  $region45: #{_device_forward.1} parent=0
    _
  %s6 = ssub.s32 1, %s4
  %s7 = scalar_select 0, %s6, %s4
  $region1: #{_device_forward.1} parent=0
    #allocation2 [shape = 'u8[8192]{0}', space=vmem, size = 0x2000, scoped, tag = 'output window, operand 0']
    #allocation3 [shape = 's32[2]{0}', space=sflag, size = 0x8, scoped, tag = 'scoped memory for _device_forward.1']
    %8 = vsyncpa [#allocation3], 0
    %s9 = scalar_lea.sflag [#allocation3], 1
    %10 = vsyncpa %s9, 0
    loop: start=0, step=1, limit=4
    $region2: #{_device_forward.1} parent=1 // loop_pre_header
      _
    $region3: #{_device_forward.1} parent=1 // loop_header
      %s12 = sphi 0, %s16
      %p13 = scmp.ge.s32.totalorder %s12, 4
      %s22 = sphi 0, %s24
      %s25 = sphi 0, %s22
      %s26 = sphi 0, %s25
      %s42 = sphi 0, %s26
      %s46 = sphi 0, %s46
      %s48 = sphi 0, %s46
      %s49 = sphi 0, %s48
      %s63 = sphi 0, %s49
      %s67 = sphi 0, %s67
      %s69 = sphi 0, %s67
      %s70 = sphi 0, %s69
      %s84 = sphi 0, %s70
      %s90 = sphi 0, %s92
      %s93 = sphi 0, %s90
      %s94 = sphi 0, %s93
      %s110 = sphi 0, %s94
    $region4: #{_device_forward.1} parent=1 // loop_header_branch
      %15 = sbr.rel (%p13) target = $region8
    $region5: #{_device_forward.1} parent=1 // loop_body
      %s17 = ssub.s32 %s12, 1
      %s18 = ssub.s32 %s12, 2
      %s19 = sadd.s32 %s12, 1
      %s20 = ssub.s32 %s12, %s19
      %p21 = scmp.eq.s32.totalorder %s20, 0
      %s23 = sadd.s32 %s22, 1
      %s24 = scalar_select %p21, %s22, %s23
      %p27 = pneg %p21
      %p28 = scmp.eq.s32.totalorder %s12, 1
      %p29 = por %p27, %p28
      %p30 = scmp.ne.s32.totalorder %s22, %s25
      %p31 = scmp.eq.s32.totalorder %s12, 0
      %p32 = por %p30, %p31
      %p33 = scmp.ne.s32.totalorder %s22, %s25
      %p34 = scmp.eq.s32.totalorder %s17, 1
      %p35 = por %p33, %p34
      %p36 = scmp.ne.s32.totalorder %s25, %s26
      %p37 = scmp.eq.s32.totalorder %s17, 0
      %p38 = por %p36, %p37
      %p39 = scmp.ne.s32.totalorder %s25, %s26
      %p40 = scmp.eq.s32.totalorder %s18, 1
      %p41 = por %p39, %p40
      %p43 = scmp.ne.s32.totalorder %s26, %s42
      %p44 = scmp.eq.s32.totalorder %s18, 0
      %p45 = por %p43, %p44
      %s47 = sadd.s32 %s46, 1
      %p50 = scmp.eq.s32.totalorder %s12, 1
      %p51 = scmp.ne.s32.totalorder %s46, %s48
      %p52 = scmp.eq.s32.totalorder %s12, 0
      %p53 = por %p51, %p52
      %p54 = scmp.ne.s32.totalorder %s46, %s48
      %p55 = scmp.eq.s32.totalorder %s17, 1
      %p56 = por %p54, %p55
      %p57 = scmp.ne.s32.totalorder %s48, %s49
      %p58 = scmp.eq.s32.totalorder %s17, 0
      %p59 = por %p57, %p58
      %p60 = scmp.ne.s32.totalorder %s48, %s49
      %p61 = scmp.eq.s32.totalorder %s18, 1
      %p62 = por %p60, %p61
      %p64 = scmp.ne.s32.totalorder %s49, %s63
      %p65 = scmp.eq.s32.totalorder %s18, 0
      %p66 = por %p64, %p65
      %s68 = sadd.s32 %s67, 1
      %p71 = scmp.eq.s32.totalorder %s12, 1
      %p72 = scmp.ne.s32.totalorder %s67, %s69
      %p73 = scmp.eq.s32.totalorder %s12, 0
      %p74 = por %p72, %p73
      %p75 = scmp.ne.s32.totalorder %s67, %s69
      %p76 = scmp.eq.s32.totalorder %s17, 1
      %p77 = por %p75, %p76
      %p78 = scmp.ne.s32.totalorder %s69, %s70
      %p79 = scmp.eq.s32.totalorder %s17, 0
      %p80 = por %p78, %p79
      %p81 = scmp.ne.s32.totalorder %s69, %s70
      %p82 = scmp.eq.s32.totalorder %s18, 1
      %p83 = por %p81, %p82
      %p85 = scmp.ne.s32.totalorder %s70, %s84
      %p86 = scmp.eq.s32.totalorder %s18, 0
      %p87 = por %p85, %p86
      %s88 = ssub.s32 %s12, %s19
      %p89 = scmp.eq.s32.totalorder %s88, 0
      %s91 = sadd.s32 %s90, 1
      %s92 = scalar_select %p89, %s90, %s91
      %p95 = pneg %p89
      %p96 = scmp.eq.s32.totalorder %s12, 1
      %p97 = por %p95, %p96
      %p98 = scmp.ne.s32.totalorder %s90, %s93
      %p99 = scmp.eq.s32.totalorder %s12, 0
      %p100 = por %p98, %p99
      %p101 = scmp.ne.s32.totalorder %s90, %s93
      %p102 = scmp.eq.s32.totalorder %s17, 1
      %p103 = por %p101, %p102
      %p104 = scmp.ne.s32.totalorder %s93, %s94
      %p105 = scmp.eq.s32.totalorder %s17, 0
      %p106 = por %p104, %p105
      %p107 = scmp.ne.s32.totalorder %s93, %s94
      %p108 = scmp.eq.s32.totalorder %s18, 1
      %p109 = por %p107, %p108
      %p111 = scmp.ne.s32.totalorder %s94, %s110
      %p112 = scmp.eq.s32.totalorder %s18, 0
      %p113 = por %p111, %p112
      %p114 = scmp.le.s32.totalorder 1, %s12
      %p115 = scmp.lt.s32.totalorder %s12, 3
      %p116 = pnand %p114, %p115
      %p117 = pneg %p116
      // Predicated region
      $region9: #{_device_forward.1} parent=5 // pred_check
        _
      $region10: #{_device_forward.1} parent=5 // pred_check_branch
        %119 = sbr.rel (%p116) target = $region12
      $region11: #{_device_forward.1} parent=5 // pred_region
        %s120 = ssub.s32 %s12, 1
        // Predicated region
        $region13: #{_device_forward.1} parent=11 // pred_check
          %p121 = pneg %p59
        $region14: #{_device_forward.1} parent=11 // pred_check_branch
          %123 = sbr.rel (%p121) target = $region16
        $region15: #{_device_forward.1} parent=11 // pred_region
          _
        $region16: #{_device_forward.1} parent=11 // pred_fallthru
          _
        // Predicated region
        $region17: #{_device_forward.1} parent=11 // pred_check
          %p124 = pneg %p80
        $region18: #{_device_forward.1} parent=11 // pred_check_branch
          %126 = sbr.rel (%p124) target = $region20
        $region19: #{_device_forward.1} parent=11 // pred_region
          _
        $region20: #{_device_forward.1} parent=11 // pred_fallthru
          _
      $region12: #{_device_forward.1} parent=5 // pred_fallthru
        _
      %p127 = scmp.lt.s32.totalorder %s12, 2
      // Predicated region
      $region21: #{_device_forward.1} parent=5 // pred_check
        %p128 = pneg %p127
      $region22: #{_device_forward.1} parent=5 // pred_check_branch
        %130 = sbr.rel (%p128) target = $region24
      $region23: #{_device_forward.1} parent=5 // pred_region
        // Predicated region
        $region25: #{_device_forward.1} parent=23 // pred_check
          %p131 = pneg %p32
        $region26: #{_device_forward.1} parent=23 // pred_check_branch
          %133 = sbr.rel (%p131) target = $region28
        $region27: #{_device_forward.1} parent=23 // pred_region
          %s134 = smul.u32 2, %s12
          %p135 = scmp.lt.s32.totalorder %s134, 3
          %s136 = scalar_select %p135, %s134, 3
          %s137 = smul.addr %s136, 4
          %s138 = scalar_lea.vmem %s0, %s137
          %s139 = smul.u32 2, %s12
        $region28: #{_device_forward.1} parent=23 // pred_fallthru
          _
      $region24: #{_device_forward.1} parent=5 // pred_fallthru
        _
      %p140 = scmp.le.s32.totalorder 1, %s12
      %p141 = scmp.lt.s32.totalorder %s12, 3
      %p142 = pnand %p140, %p141
      %p143 = pneg %p142
      // Predicated region
      $region29: #{_device_forward.1} parent=5 // pred_check
        _
      $region30: #{_device_forward.1} parent=5 // pred_check_branch
        %145 = sbr.rel (%p142) target = $region32
      $region31: #{_device_forward.1} parent=5 // pred_region
        %s146 = ssub.s32 %s12, 1
        %s147 = smul.u32 2, %s17
        %p148 = scmp.lt.s32.totalorder %s147, 3
        %s149 = scalar_select %p148, %s147, 3
        %s150 = smul.addr %s149, 4
        %s151 = scalar_lea.vmem %s0, %s150
        %p152 = pneg %p38
        %p153 = pneg %p35
        %p154 = pneg %p59
        %p155 = pneg %p56
        %p156 = pneg %p80
        %p157 = pneg %p77
        %p158 = pneg %p106
        %p159 = pneg %p103
        %s160 = sand.u32 %s93, 1
        %s161 = scalar_lea.sflag [#allocation3], %s160
        %s162 = sand.u32 %s93, 1
        %s163 = smul.addr %s162, 8
        %s164 = scalar_lea.vmem [#allocation2], %s163
        %s165 = smul.u32 2, %s17
        %p166 = scmp.lt.s32.totalorder %s165, 3
        %s167 = scalar_select %p166, %s165, 3
        %s168 = smul.addr %s167, 4
        %s169 = scalar_lea.vmem %s0, %s168
        %s170 = smul.u32 2, %s17
        %s171 = smul.u32 2, %s17
        %v173 = vld [vmem:[%s169] sm:$0xf]
        %v174 = vld [vmem:[%s169 + $0x4] sm:$0xf]
        %v175 = vld [vmem:[%s1] sm:$0xf]
        %v176 = vld [vmem:[%s1 + $0x4] sm:$0xf]
        %v177 = vld [vmem:[%s1 + $0x8] sm:$0xf]
        %v178 = vld [vmem:[%s1 + $0xc] sm:$0xf]
        %v179 = vld [vmem:[%s1 + $0x10] sm:$0xf]
        %v180 = vld [vmem:[%s1 + $0x14] sm:$0xf]
        %v181 = vld [vmem:[%s1 + $0x18] sm:$0xf]
        %v182 = vld [vmem:[%s1 + $0x1c] sm:$0xf]
        %v183 = vld [vmem:[%s1 + $0x20] sm:$0xf]
        %v184 = vld [vmem:[%s1 + $0x24] sm:$0xf]
        %v185 = vld [vmem:[%s1 + $0x28] sm:$0xf]
        %v186 = vld [vmem:[%s1 + $0x2c] sm:$0xf]
        %v187 = vld [vmem:[%s1 + $0x30] sm:$0xf]
        %v188 = vld [vmem:[%s1 + $0x34] sm:$0xf]
        %v189 = vld [vmem:[%s1 + $0x38] sm:$0xf]
        %v190 = vld [vmem:[%s1 + $0x3c] sm:$0xf]
        %v191 = vld [vmem:[%s2] sm:$0x1]
        %v193 = vlaneseq
        %v194 = vshrl.u32 %v193, 7
        %v195 = vsub.s32 0, %v194
        %v196 = vrot.slane %v191, %v195
        %v200 = vunpack.c.l.b16 %v173
        %v201 = vunpack.c.l.b16 %v174
        %v202 = vpack.c.b16 %v201, %v200
        %v220 = vunpack.c.l.b16 %v175
        %v221 = vunpack.c.l.b16 %v176
        %v222 = vunpack.c.l.b16 %v177
        %v223 = vunpack.c.l.b16 %v178
        %v224 = vunpack.c.l.b16 %v179
        %v225 = vunpack.c.l.b16 %v180
        %v226 = vunpack.c.l.b16 %v181
        %v227 = vunpack.c.l.b16 %v182
        %v228 = vunpack.c.l.b16 %v183
        %v229 = vunpack.c.l.b16 %v184
        %v230 = vunpack.c.l.b16 %v185
        %v231 = vunpack.c.l.b16 %v186
        %v232 = vunpack.c.l.b16 %v187
        %v233 = vunpack.c.l.b16 %v188
        %v234 = vunpack.c.l.b16 %v189
        %v235 = vunpack.c.l.b16 %v190
        %v236 = vpack.c.b16 %v221, %v220
        %v237 = vpack.c.b16 %v223, %v222
        %v238 = vpack.c.b16 %v225, %v224
        %v239 = vpack.c.b16 %v227, %v226
        %v240 = vpack.c.b16 %v229, %v228
        %v241 = vpack.c.b16 %v231, %v230
        %v242 = vpack.c.b16 %v233, %v232
        %v243 = vpack.c.b16 %v235, %v234
        %252 = vmatprep.subr.bf16.mxu0 0
        %253 = vmatpush1.bf16.msra.mxu0 %v243
        %254 = vmatprep.subr.bf16.mxu0 0
        %255 = vmatpush1.bf16.msra.mxu0 %v242
        %256 = vmatprep.subr.bf16.mxu0 0
        %257 = vmatpush1.bf16.msra.mxu0 %v241
        %258 = vmatprep.subr.bf16.mxu0 0
        %259 = vmatpush1.bf16.msra.mxu0 %v240
        %260 = vmatprep.subr.bf16.mxu0 0
        %261 = vmatpush1.bf16.msra.mxu0 %v239
        %262 = vmatprep.subr.bf16.mxu0 0
        %263 = vmatpush1.bf16.msra.mxu0 %v238
        %264 = vmatprep.subr.bf16.mxu0 0
        %265 = vmatpush1.bf16.msra.mxu0 %v237
        %266 = vmatprep.subr.bf16.mxu0 0
        %267 = vmatpush1.bf16.msra.mxu0 %v236
        %268 = vmatprep.subr.bf16.mxu0 0
        %269 = vmatpush2.bf16.msra.mxu0 0
        %270 = vmatprep.subr.bf16.mxu0 0
        %271 = vmatpush2.bf16.msra.mxu0 0
        %272 = vmatprep.subr.bf16.mxu0 0
        %273 = vmatpush2.bf16.msra.mxu0 0
        %274 = vmatprep.subr.bf16.mxu0 0
        %275 = vmatpush2.bf16.msra.mxu0 0
        %276 = vmatprep.subr.bf16.mxu0 0
        %277 = vmatpush2.bf16.msra.mxu0 0
        %278 = vmatprep.subr.bf16.mxu0 0
        %279 = vmatpush2.bf16.msra.mxu0 0
        %280 = vmatprep.subr.bf16.mxu0 0
        %281 = vmatpush2.bf16.msra.mxu0 0
        %282 = vmatprep.subr.bf16.mxu0 0
        %283 = vmatpush2.bf16.msra.mxu0 0
        %284 = vmatprep.mubr.bf16.mxu0 0
        %285 = vmatmul.mubr.bf16.gmra.mxu0 %v202
        %v286 = vpop.f32.mrf.mxu0
        %v287 = vadd.f32 %v196, %v286
        %v288 = vpop.f32.mrf.mxu0
        %v289 = vpop.f32.mrf.mxu0
        %v290 = vadd.f32 %v196, %v289
        %v291 = vpop.f32.mrf.mxu0
        %292 = vdwg.mxu0
        %v293 = vpack.c.bf16 %v290, %v287
        %v295 = vunpack.c.l.b16 %v293
        %v296 = vunpack.c.h.b16 %v293
        %v297 = vpack.c.b16 %v295, %v295
        %v298 = vpack.c.b16 %v296, %v296
        %301 = vst [vmem:[%s164] sm:$0xf] %v297
        %302 = vst [vmem:[%s164 + $0x4] sm:$0xf] %v298
        %s303 = sand.u32 %s93, 1
        %s304 = scalar_lea.sflag [#allocation3], %s303
        %s305 = sand.u32 %s93, 1
        %s306 = smul.addr %s305, 8
        %s307 = scalar_lea.vmem [#allocation2], %s306
        // Predicated region
        $region33: #{_device_forward.1} parent=31 // pred_check
          %p308 = pneg %p103
        $region34: #{_device_forward.1} parent=31 // pred_check_branch
          %310 = sbr.rel (%p308) target = $region36
        $region35: #{_device_forward.1} parent=31 // pred_region
          %s311 = smul.u32 2, %s17
          %s313 = ssub.s32 128, 128
          %314 = vsyncadd %s304, %s313
          %s315 = smul.addr %s311, 64
          %s316 = scalar_lea.hbm %s3, %s315
          %s317 = sshll.u32 %s307, 4
          %s318 = int_to_ptr.vmem [resolvable:$true] %s317
          %323 = dma.vmem_to_hbm [thread:$0]  %s318, 128, %s316, %s304, 64, 64, 4
        $region36: #{_device_forward.1} parent=31 // pred_fallthru
          _
      $region32: #{_device_forward.1} parent=5 // pred_fallthru
        _
      %p324 = scmp.le.s32.totalorder 2, %s12
      // Predicated region
      $region37: #{_device_forward.1} parent=5 // pred_check
        %p325 = pneg %p324
      $region38: #{_device_forward.1} parent=5 // pred_check_branch
        %327 = sbr.rel (%p325) target = $region40
      $region39: #{_device_forward.1} parent=5 // pred_region
        %s328 = ssub.s32 %s12, 2
        // Predicated region
        $region41: #{_device_forward.1} parent=39 // pred_check
          %p329 = pneg %p109
        $region42: #{_device_forward.1} parent=39 // pred_check_branch
          %331 = sbr.rel (%p329) target = $region44
        $region43: #{_device_forward.1} parent=39 // pred_region
          %s332 = sand.u32 %s94, 1
          %s333 = scalar_lea.sflag [#allocation3], %s332
          %s334 = sand.u32 %s94, 1
          %s335 = smul.addr %s334, 8
          %s336 = scalar_lea.vmem [#allocation2], %s335
          %337 = dma.done %s333, 128
        $region44: #{_device_forward.1} parent=39 // pred_fallthru
          _
      $region40: #{_device_forward.1} parent=5 // pred_fallthru
        _
    $region6: #{_device_forward.1} parent=1 // loop_footer
      %s16 = sadd.s32 1, %s12
    $region7: #{_device_forward.1} parent=1 // loop_footer_branch
      %11 = sbr.rel target = $region3
    $region8: #{_device_forward.1} parent=1 // loop_exit
      _
    %338 = vsyncpa [#allocation3], 1
    %s339 = scalar_lea.sflag [#allocation3], 1
    %340 = vsyncpa %s339, 1

</llo_original>
